<compile_context>
chip_gen: v7x
topology: tpu7x:2x2x1
jax: 0.10.0
libtpu: 0.0.40
codegen_flags: <defaults>
</compile_context>

<pallas_src>
import functools

import jax
import jax.numpy as jnp
import numpy as np
from jax.experimental import pallas as pl
from jax.experimental.pallas import tpu as pltpu


def _morph_pre_kernel(x_ref, o_ref, scr_ref, *, k):
    """One batch element.

    x_ref:   (2, H, W)  -- channels 0 and 1 of the input (channel 2 unused)
    o_ref:   (3, H, W)  -- output
    scr_ref: (H + 2*(k-1), W + 2*(k-1)) -- zero-halo scratch plane
    """
    _, H, W = x_ref.shape
    pm = k - 1                       # halo width (max pad over all stages)

    # Halo stays zero for every stage; the interior is always (re)written
    # before it is read, so a single zero-fill covers the whole kernel.
    scr_ref[...] = jnp.zeros_like(scr_ref)

    def win(r0, c0):
        # Statically offset (H, W) window of the scratch plane.
        return scr_ref[pl.ds(r0, H), pl.ds(c0, W)]

    def morph(plane, op, taps):
        """Separable taps x taps min/max of the zero-padded plane."""
        p = (taps - 1) // 2
        # --- column (lane) pass: acc[i, j] = op_{|d|<=p} plane[i, j+d], 0 outside
        scr_ref[pl.ds(pm, H), pl.ds(pm, W)] = plane
        acc = plane                                  # d = 0 tap
        for d in range(1, p + 1):
            acc = op(acc, win(pm, pm + d))
            acc = op(acc, win(pm, pm - d))
        # --- row (sublane) pass: out-of-range rows reduce over zeros -> 0 = halo
        scr_ref[pl.ds(pm, H), pl.ds(pm, W)] = acc
        out = acc                                    # d = 0 tap
        for d in range(1, p + 1):
            out = op(out, win(pm + d, pm))
            out = op(out, win(pm - d, pm))
        return out

    x0 = x_ref[0]                                    # channel-0 plane (H, W)
    e = morph(x0, jnp.minimum, k)                    # erode_k
    x_d = morph(e, jnp.maximum, 2 * k - 1)           # dilate_k(dilate_k(.)) fused
    x_close = morph(x_d, jnp.minimum, k)             # erode_k
    x_pre = x_d - x_close                            # morphological gradient

    o_ref[0:2] = x_ref[...]                          # pass-through channels 0, 1
    o_ref[2] = x_pre.astype(o_ref.dtype)


@functools.partial(jax.jit, static_argnames=("k",))
def morph_pre_forward(x, k=3):
    B, C, H, W = x.shape
    assert C == 3, "Morph_pre: in_ch must be 3"
    assert k % 2 == 1 and k >= 1, "Morph_pre: kernel size must be odd"
    assert H >= k and W >= k
    pm = k - 1

    plane_bytes = H * W * jnp.dtype(x.dtype).itemsize
    # double-buffered in (2 planes) + out (3 planes) blocks + scratch/live values
    vmem_need = (2 * (2 + 3) + 8) * plane_bytes
    vmem_limit = int(min(max(32 * 1024 * 1024, vmem_need), 100 * 1024 * 1024))

    kernel = functools.partial(_morph_pre_kernel, k=k)
    return pl.pallas_call(
        kernel,
        out_shape=jax.ShapeDtypeStruct((B, 3, H, W), x.dtype),
        grid=(B,),
        in_specs=[
            # Only channels 0 and 1 are ever read -> do not DMA channel 2.
            pl.BlockSpec((None, 2, H, W), lambda b: (b, 0, 0, 0)),
        ],
        out_specs=pl.BlockSpec((None, 3, H, W), lambda b: (b, 0, 0, 0)),
        scratch_shapes=[pltpu.VMEM((H + 2 * pm, W + 2 * pm), x.dtype)],
        compiler_params=pltpu.CompilerParams(
            dimension_semantics=("parallel",),
            vmem_limit_bytes=vmem_limit),
    )(x)


# ----------------------------------------------------------------------------
# Pure-JAX reference (mirrors the PyTorch module op-for-op, unfused) for
# correctness — also validates the dilate-dilate fusion used in the kernel.
# ----------------------------------------------------------------------------
def _morph_ref(x1, k, reduce_fn):
    b, c, h, w = x1.shape
    p = (k - 1) // 2
    xp = jnp.pad(x1, ((0, 0), (0, 0), (p, p), (p, p)))
    wins = jnp.stack([xp[:, :, i:i + h, j:j + w]
                      for i in range(k) for j in range(k)], axis=-1)
    return reduce_fn(wins, axis=-1)


def morph_pre_ref(x, k=3):
    x_open = _morph_ref(_morph_ref(x[:, :1], k, jnp.min), k, jnp.max)
    x_d = _morph_ref(x_open, k, jnp.max)
    x_close = _morph_ref(_morph_ref(x_open, k, jnp.max), k, jnp.min)
    x_pre = x_d - x_close
    return jnp.concatenate([x[:, :2], x_pre], axis=1)


if __name__ == "__main__":
    key = jax.random.PRNGKey(0)
    B, C, H, W, k = 2, 3, 16, 16, 3
    x = jax.random.normal(key, (B, C, H, W), jnp.float32)

    out = morph_pre_forward(x, k=k)
    jax.block_until_ready(out)
    assert out.shape == (B, C, H, W)

    ref = morph_pre_ref(x, k=k)
    np.testing.assert_allclose(np.asarray(out), np.asarray(ref),
                               rtol=1e-6, atol=1e-6)
    print("KERNEL_OK")
</pallas_src>

<mosaic_0001>
module attributes {stable_mosaic.version = 11 : i64} {
  func.func @_morph_pre_kernel(%arg0: i32, %arg1: memref<1x2x16x16xf32, #tpu.memory_space<vmem>>, %arg2: memref<1x3x16x16xf32, #tpu.memory_space<vmem>>, %arg3: memref<20x20xf32, #tpu.memory_space<vmem>>) attributes {dimension_semantics = [#tpu.dimension_semantics<parallel>], iteration_bounds = array<i64: 2>, scalar_prefetch = 0 : i64, scratch_operands = 1 : i64, tpu.core_type = #tpu.core_type<tc>, window_params = [{transform_indices = @transform_0, window_bounds = array<i64: 1, 2, 16, 16>}, {transform_indices = @transform_1, window_bounds = array<i64: 1, 3, 16, 16>}]} {
    %cst = arith.constant 0.000000e+00 : f32
    %0 = vector.broadcast %cst : f32 to vector<20x20xf32>
    %c0 = arith.constant 0 : index
    %c0_0 = arith.constant 0 : index
    %1 = vector.load %arg3[%c0, %c0_0] : memref<20x20xf32, #tpu.memory_space<vmem>>, vector<20x20xf32>
    tpu.vector_store %arg3[%c0, %c0_0], %0 {strides = array<i32>} : memref<20x20xf32, #tpu.memory_space<vmem>>, vector<20x20xf32>,
    %c0_1 = arith.constant 0 : index
    %c0_2 = arith.constant 0 : index
    %c0_3 = arith.constant 0 : index
    %c0_4 = arith.constant 0 : index
    %2 = vector.load %arg1[%c0_1, %c0_2, %c0_3, %c0_4] : memref<1x2x16x16xf32, #tpu.memory_space<vmem>>, vector<1x1x16x16xf32>
    %3 = vector.shape_cast %2 : vector<1x1x16x16xf32> to vector<16x16xf32>
    %c2 = arith.constant 2 : index
    %c2_5 = arith.constant 2 : index
    %4 = vector.load %arg3[%c2, %c2_5] : memref<20x20xf32, #tpu.memory_space<vmem>>, vector<16x16xf32>
    tpu.vector_store %arg3[%c2, %c2_5], %3 {strides = array<i32>} : memref<20x20xf32, #tpu.memory_space<vmem>>, vector<16x16xf32>,
    %c2_6 = arith.constant 2 : index
    %c3 = arith.constant 3 : index
    %5 = vector.load %arg3[%c2_6, %c3] : memref<20x20xf32, #tpu.memory_space<vmem>>, vector<16x16xf32>
    %6 = arith.minimumf %3, %5 : vector<16x16xf32>
    %c2_7 = arith.constant 2 : index
    %c1 = arith.constant 1 : index
    %7 = vector.load %arg3[%c2_7, %c1] : memref<20x20xf32, #tpu.memory_space<vmem>>, vector<16x16xf32>
    %8 = arith.minimumf %6, %7 : vector<16x16xf32>
    %c2_8 = arith.constant 2 : index
    %c2_9 = arith.constant 2 : index
    %9 = vector.load %arg3[%c2_8, %c2_9] : memref<20x20xf32, #tpu.memory_space<vmem>>, vector<16x16xf32>
    tpu.vector_store %arg3[%c2_8, %c2_9], %8 {strides = array<i32>} : memref<20x20xf32, #tpu.memory_space<vmem>>, vector<16x16xf32>,
    %c3_10 = arith.constant 3 : index
    %c2_11 = arith.constant 2 : index
    %10 = vector.load %arg3[%c3_10, %c2_11] : memref<20x20xf32, #tpu.memory_space<vmem>>, vector<16x16xf32>
    %11 = arith.minimumf %8, %10 : vector<16x16xf32>
    %c1_12 = arith.constant 1 : index
    %c2_13 = arith.constant 2 : index
    %12 = vector.load %arg3[%c1_12, %c2_13] : memref<20x20xf32, #tpu.memory_space<vmem>>, vector<16x16xf32>
    %13 = arith.minimumf %11, %12 : vector<16x16xf32>
    %c2_14 = arith.constant 2 : index
    %c2_15 = arith.constant 2 : index
    %14 = vector.load %arg3[%c2_14, %c2_15] : memref<20x20xf32, #tpu.memory_space<vmem>>, vector<16x16xf32>
    tpu.vector_store %arg3[%c2_14, %c2_15], %13 {strides = array<i32>} : memref<20x20xf32, #tpu.memory_space<vmem>>, vector<16x16xf32>,
    %c2_16 = arith.constant 2 : index
    %c3_17 = arith.constant 3 : index
    %15 = vector.load %arg3[%c2_16, %c3_17] : memref<20x20xf32, #tpu.memory_space<vmem>>, vector<16x16xf32>
    %16 = arith.maximumf %13, %15 : vector<16x16xf32>
    %c2_18 = arith.constant 2 : index
    %c1_19 = arith.constant 1 : index
    %17 = vector.load %arg3[%c2_18, %c1_19] : memref<20x20xf32, #tpu.memory_space<vmem>>, vector<16x16xf32>
    %18 = arith.maximumf %16, %17 : vector<16x16xf32>
    %c2_20 = arith.constant 2 : index
    %c4 = arith.constant 4 : index
    %19 = vector.load %arg3[%c2_20, %c4] : memref<20x20xf32, #tpu.memory_space<vmem>>, vector<16x16xf32>
    %20 = arith.maximumf %18, %19 : vector<16x16xf32>
    %c2_21 = arith.constant 2 : index
    %c0_22 = arith.constant 0 : index
    %21 = vector.load %arg3[%c2_21, %c0_22] : memref<20x20xf32, #tpu.memory_space<vmem>>, vector<16x16xf32>
    %22 = arith.maximumf %20, %21 : vector<16x16xf32>
    %c2_23 = arith.constant 2 : index
    %c2_24 = arith.constant 2 : index
    %23 = vector.load %arg3[%c2_23, %c2_24] : memref<20x20xf32, #tpu.memory_space<vmem>>, vector<16x16xf32>
    tpu.vector_store %arg3[%c2_23, %c2_24], %22 {strides = array<i32>} : memref<20x20xf32, #tpu.memory_space<vmem>>, vector<16x16xf32>,
    %c3_25 = arith.constant 3 : index
    %c2_26 = arith.constant 2 : index
    %24 = vector.load %arg3[%c3_25, %c2_26] : memref<20x20xf32, #tpu.memory_space<vmem>>, vector<16x16xf32>
    %25 = arith.maximumf %22, %24 : vector<16x16xf32>
    %c1_27 = arith.constant 1 : index
    %c2_28 = arith.constant 2 : index
    %26 = vector.load %arg3[%c1_27, %c2_28] : memref<20x20xf32, #tpu.memory_space<vmem>>, vector<16x16xf32>
    %27 = arith.maximumf %25, %26 : vector<16x16xf32>
    %c4_29 = arith.constant 4 : index
    %c2_30 = arith.constant 2 : index
    %28 = vector.load %arg3[%c4_29, %c2_30] : memref<20x20xf32, #tpu.memory_space<vmem>>, vector<16x16xf32>
    %29 = arith.maximumf %27, %28 : vector<16x16xf32>
    %c0_31 = arith.constant 0 : index
    %c2_32 = arith.constant 2 : index
    %30 = vector.load %arg3[%c0_31, %c2_32] : memref<20x20xf32, #tpu.memory_space<vmem>>, vector<16x16xf32>
    %31 = arith.maximumf %29, %30 : vector<16x16xf32>
    %c2_33 = arith.constant 2 : index
    %c2_34 = arith.constant 2 : index
    %32 = vector.load %arg3[%c2_33, %c2_34] : memref<20x20xf32, #tpu.memory_space<vmem>>, vector<16x16xf32>
    tpu.vector_store %arg3[%c2_33, %c2_34], %31 {strides = array<i32>} : memref<20x20xf32, #tpu.memory_space<vmem>>, vector<16x16xf32>,
    %c2_35 = arith.constant 2 : index
    %c3_36 = arith.constant 3 : index
    %33 = vector.load %arg3[%c2_35, %c3_36] : memref<20x20xf32, #tpu.memory_space<vmem>>, vector<16x16xf32>
    %34 = arith.minimumf %31, %33 : vector<16x16xf32>
    %c2_37 = arith.constant 2 : index
    %c1_38 = arith.constant 1 : index
    %35 = vector.load %arg3[%c2_37, %c1_38] : memref<20x20xf32, #tpu.memory_space<vmem>>, vector<16x16xf32>
    %36 = arith.minimumf %34, %35 : vector<16x16xf32>
    %c2_39 = arith.constant 2 : index
    %c2_40 = arith.constant 2 : index
    %37 = vector.load %arg3[%c2_39, %c2_40] : memref<20x20xf32, #tpu.memory_space<vmem>>, vector<16x16xf32>
    tpu.vector_store %arg3[%c2_39, %c2_40], %36 {strides = array<i32>} : memref<20x20xf32, #tpu.memory_space<vmem>>, vector<16x16xf32>,
    %c3_41 = arith.constant 3 : index
    %c2_42 = arith.constant 2 : index
    %38 = vector.load %arg3[%c3_41, %c2_42] : memref<20x20xf32, #tpu.memory_space<vmem>>, vector<16x16xf32>
    %39 = arith.minimumf %36, %38 : vector<16x16xf32>
    %c1_43 = arith.constant 1 : index
    %c2_44 = arith.constant 2 : index
    %40 = vector.load %arg3[%c1_43, %c2_44] : memref<20x20xf32, #tpu.memory_space<vmem>>, vector<16x16xf32>
    %41 = arith.minimumf %39, %40 : vector<16x16xf32>
    %42 = arith.subf %31, %41 : vector<16x16xf32>
    %c0_45 = arith.constant 0 : index
    %c0_46 = arith.constant 0 : index
    %c0_47 = arith.constant 0 : index
    %c0_48 = arith.constant 0 : index
    %43 = vector.load %arg1[%c0_45, %c0_46, %c0_47, %c0_48] : memref<1x2x16x16xf32, #tpu.memory_space<vmem>>, vector<1x2x16x16xf32>
    %44 = vector.shape_cast %43 : vector<1x2x16x16xf32> to vector<2x16x16xf32>
    %c0_49 = arith.constant 0 : index
    %c0_50 = arith.constant 0 : index
    %c0_51 = arith.constant 0 : index
    %c0_52 = arith.constant 0 : index
    %45 = vector.load %arg2[%c0_49, %c0_50, %c0_51, %c0_52] : memref<1x3x16x16xf32, #tpu.memory_space<vmem>>, vector<1x2x16x16xf32>
    %46 = vector.shape_cast %45 : vector<1x2x16x16xf32> to vector<2x16x16xf32>
    %47 = vector.shape_cast %44 : vector<2x16x16xf32> to vector<1x2x16x16xf32>
    tpu.vector_store %arg2[%c0_49, %c0_50, %c0_51, %c0_52], %47 {strides = array<i32>} : memref<1x3x16x16xf32, #tpu.memory_space<vmem>>, vector<1x2x16x16xf32>,
    %c0_53 = arith.constant 0 : index
    %c2_54 = arith.constant 2 : index
    %c0_55 = arith.constant 0 : index
    %c0_56 = arith.constant 0 : index
    %48 = vector.load %arg2[%c0_53, %c2_54, %c0_55, %c0_56] : memref<1x3x16x16xf32, #tpu.memory_space<vmem>>, vector<1x1x16x16xf32>
    %49 = vector.shape_cast %48 : vector<1x1x16x16xf32> to vector<16x16xf32>
    %50 = vector.shape_cast %42 : vector<16x16xf32> to vector<1x1x16x16xf32>
    tpu.vector_store %arg2[%c0_53, %c2_54, %c0_55, %c0_56], %50 {strides = array<i32>} : memref<1x3x16x16xf32, #tpu.memory_space<vmem>>, vector<1x1x16x16xf32>,
    return
  }
  func.func @transform_0(%arg0: i32) -> (i32, i32, i32, i32) {
    %c0_i32 = arith.constant 0 : i32
    %c0_i32_0 = arith.constant 0 : i32
    %c0_i32_1 = arith.constant 0 : i32
    %c0_i32_2 = arith.constant 0 : i32
    return %arg0, %c0_i32, %c0_i32_0, %c0_i32_1 : i32, i32, i32, i32
  }
  func.func @transform_1(%arg0: i32) -> (i32, i32, i32, i32) {
    %c0_i32 = arith.constant 0 : i32
    %c0_i32_0 = arith.constant 0 : i32
    %c0_i32_1 = arith.constant 0 : i32
    %c0_i32_2 = arith.constant 0 : i32
    return %arg0, %c0_i32, %c0_i32_0, %c0_i32_1 : i32, i32, i32, i32
  }
}

</mosaic_0001>

<llo_original>
// kernel: morph_pre_forward.1
$region0: #{morph_pre_forward.1}
  #allocation0 [shape = 'u32[]', space=smem, size = 0x4, offset = 0x4, fixed_abs, tag = 'smem constant byte address 0x4 - core index']
  #allocation1 [shape = 'u32[144,128]{1,0:T(1,128)}', space=vmem, size = 0x12000, scoped, tag = 'internal scratch']
  #allocation2 [shape = 'f32[20,20]{1,0:T(8,128)}', space=vmem, size = 0x3000, scoped, tag = 'scratch operand']
  %s0 = inlined_call_operand.hbm [shape: f32[2,3,16,16], index: 0, kind: input, shape index: {}]
  %s1 = inlined_call_operand.hbm [shape: f32[2,3,16,16], index: 1, kind: output, shape index: {}]
  %s2 = sld [smem:[#allocation0]]
  $region41: #{morph_pre_forward.1} parent=0
    _
  %s4 = ssub.s32 1, %s2
  %s5 = scalar_select 0, %s4, %s2
  $region1: #{morph_pre_forward.1} parent=0
    #allocation3 [shape = 'u8[32768]{0}', space=vmem, size = 0x8000, scoped, tag = 'input window, operand 0']
    #allocation4 [shape = 's32[2]{0}', space=sflag, size = 0x8, scoped, tag = 'scoped memory for morph_pre_forward.1']
    #allocation5 [shape = 's32[2]{0}', space=sflag, size = 0x8, scoped, tag = 'scoped memory for morph_pre_forward.1']
    #allocation6 [shape = 'u8[49152]{0}', space=vmem, size = 0xc000, scoped, tag = 'output window, operand 0']
    %6 = vsyncpa [#allocation4], 0
    %s7 = scalar_lea.sflag [#allocation4], 1
    %8 = vsyncpa %s7, 0
    %9 = vsyncpa [#allocation5], 0
    %s10 = scalar_lea.sflag [#allocation5], 1
    %11 = vsyncpa %s10, 0
    loop: start=0, step=1, limit=4
    $region2: #{morph_pre_forward.1} parent=1 // loop_pre_header
      _
    $region3: #{morph_pre_forward.1} parent=1 // loop_header
      %s13 = sphi 0, %s17
      %p14 = scmp.ge.s32.totalorder %s13, 4
      %s23 = sphi 0, %s25
      %s26 = sphi 0, %s23
      %s27 = sphi 0, %s26
      %s43 = sphi 0, %s27
      %s49 = sphi 0, %s51
      %s52 = sphi 0, %s49
      %s53 = sphi 0, %s52
      %s69 = sphi 0, %s53
    $region4: #{morph_pre_forward.1} parent=1 // loop_header_branch
      %16 = sbr.rel (%p14) target = $region8
    $region5: #{morph_pre_forward.1} parent=1 // loop_body
      %s18 = ssub.s32 %s13, 1
      %s19 = ssub.s32 %s13, 2
      %s20 = sadd.s32 %s13, 1
      %s21 = ssub.s32 %s13, %s20
      %p22 = scmp.eq.s32.totalorder %s21, 0
      %s24 = sadd.s32 %s23, 1
      %s25 = scalar_select %p22, %s23, %s24
      %p28 = pneg %p22
      %p29 = scmp.eq.s32.totalorder %s13, 1
      %p30 = por %p28, %p29
      %p31 = scmp.ne.s32.totalorder %s23, %s26
      %p32 = scmp.eq.s32.totalorder %s13, 0
      %p33 = por %p31, %p32
      %p34 = scmp.ne.s32.totalorder %s23, %s26
      %p35 = scmp.eq.s32.totalorder %s18, 1
      %p36 = por %p34, %p35
      %p37 = scmp.ne.s32.totalorder %s26, %s27
      %p38 = scmp.eq.s32.totalorder %s18, 0
      %p39 = por %p37, %p38
      %p40 = scmp.ne.s32.totalorder %s26, %s27
      %p41 = scmp.eq.s32.totalorder %s19, 1
      %p42 = por %p40, %p41
      %p44 = scmp.ne.s32.totalorder %s27, %s43
      %p45 = scmp.eq.s32.totalorder %s19, 0
      %p46 = por %p44, %p45
      %s47 = ssub.s32 %s13, %s20
      %p48 = scmp.eq.s32.totalorder %s47, 0
      %s50 = sadd.s32 %s49, 1
      %s51 = scalar_select %p48, %s49, %s50
      %p54 = pneg %p48
      %p55 = scmp.eq.s32.totalorder %s13, 1
      %p56 = por %p54, %p55
      %p57 = scmp.ne.s32.totalorder %s49, %s52
      %p58 = scmp.eq.s32.totalorder %s13, 0
      %p59 = por %p57, %p58
      %p60 = scmp.ne.s32.totalorder %s49, %s52
      %p61 = scmp.eq.s32.totalorder %s18, 1
      %p62 = por %p60, %p61
      %p63 = scmp.ne.s32.totalorder %s52, %s53
      %p64 = scmp.eq.s32.totalorder %s18, 0
      %p65 = por %p63, %p64
      %p66 = scmp.ne.s32.totalorder %s52, %s53
      %p67 = scmp.eq.s32.totalorder %s19, 1
      %p68 = por %p66, %p67
      %p70 = scmp.ne.s32.totalorder %s53, %s69
      %p71 = scmp.eq.s32.totalorder %s19, 0
      %p72 = por %p70, %p71
      %p73 = scmp.le.s32.totalorder 1, %s13
      %p74 = scmp.lt.s32.totalorder %s13, 3
      %p75 = pnand %p73, %p74
      %p76 = pneg %p75
      // Predicated region
      $region9: #{morph_pre_forward.1} parent=5 // pred_check
        _
      $region10: #{morph_pre_forward.1} parent=5 // pred_check_branch
        %78 = sbr.rel (%p75) target = $region12
      $region11: #{morph_pre_forward.1} parent=5 // pred_region
        %s79 = ssub.s32 %s13, 1
      $region12: #{morph_pre_forward.1} parent=5 // pred_fallthru
        _
      %p80 = scmp.lt.s32.totalorder %s13, 2
      // Predicated region
      $region13: #{morph_pre_forward.1} parent=5 // pred_check
        %p81 = pneg %p80
      $region14: #{morph_pre_forward.1} parent=5 // pred_check_branch
        %83 = sbr.rel (%p81) target = $region16
      $region15: #{morph_pre_forward.1} parent=5 // pred_region
        // Predicated region
        $region17: #{morph_pre_forward.1} parent=15 // pred_check
          %p84 = pneg %p33
        $region18: #{morph_pre_forward.1} parent=15 // pred_check_branch
          %86 = sbr.rel (%p84) target = $region20
        $region19: #{morph_pre_forward.1} parent=15 // pred_region
          %s87 = sand.u32 %s23, 1
          %s88 = scalar_lea.sflag [#allocation4], %s87
          %s89 = sand.u32 %s23, 1
          %s90 = smul.addr %s89, 32
          %s91 = scalar_lea.vmem [#allocation3], %s90
          %s93 = ssub.s32 512, 512
          %94 = vsyncadd %s88, %s93
          %s95 = smul.addr %s13, 6
          %s96 = smul.addr %s95, 128
          %s97 = scalar_lea.hbm %s0, %s96
          %s98 = sshll.u32 %s91, 4
          %s99 = int_to_ptr.vmem [resolvable:$true] %s98
          %104 = dma.hbm_to_vmem [thread:$0]  %s97, 512, %s99, %s88, 128, 128, 8
        $region20: #{morph_pre_forward.1} parent=15 // pred_fallthru
          _
      $region16: #{morph_pre_forward.1} parent=5 // pred_fallthru
        _
      %p105 = scmp.le.s32.totalorder 1, %s13
      %p106 = scmp.lt.s32.totalorder %s13, 3
      %p107 = pnand %p105, %p106
      %p108 = pneg %p107
      // Predicated region
      $region21: #{morph_pre_forward.1} parent=5 // pred_check
        _
      $region22: #{morph_pre_forward.1} parent=5 // pred_check_branch
        %110 = sbr.rel (%p107) target = $region24
      $region23: #{morph_pre_forward.1} parent=5 // pred_region
        %s111 = ssub.s32 %s13, 1
        %s112 = sand.u32 %s26, 1
        %s113 = scalar_lea.sflag [#allocation4], %s112
        %s114 = sand.u32 %s26, 1
        %s115 = smul.addr %s114, 32
        %s116 = scalar_lea.vmem [#allocation3], %s115
        // Predicated region
        $region25: #{morph_pre_forward.1} parent=23 // pred_check
          %p117 = pneg %p39
        $region26: #{morph_pre_forward.1} parent=23 // pred_check_branch
          %119 = sbr.rel (%p117) target = $region28
        $region27: #{morph_pre_forward.1} parent=23 // pred_region
          %120 = dma.done %s113, 512
        $region28: #{morph_pre_forward.1} parent=23 // pred_fallthru
          _
        %s121 = sand.u32 %s26, 1
        %s122 = scalar_lea.sflag [#allocation4], %s121
        %s123 = sand.u32 %s26, 1
        %s124 = smul.addr %s123, 32
        %s125 = scalar_lea.vmem [#allocation3], %s124
        %p126 = pneg %p39
        %p127 = pneg %p36
        %p128 = pneg %p65
        %p129 = pneg %p62
        %s130 = sand.u32 %s52, 1
        %s131 = scalar_lea.sflag [#allocation5], %s130
        %s132 = sand.u32 %s52, 1
        %s133 = smul.addr %s132, 48
        %s134 = scalar_lea.vmem [#allocation6], %s133
        %vm135 = vcmask 162816
        %136 = vst.msk [vmem:[#allocation2] sm:$0xff] %vm135, 0.0
        %137 = vst.msk [vmem:[#allocation2 + $0x8] sm:$0xff] %vm135, 0.0
        %vm138 = vcmask 158720
        %139 = vst.msk [vmem:[#allocation2 + $0x10] sm:$0xf] %vm138, 0.0
        %v140 = vld [vmem:[%s116] sm:$0xff]
        %v141 = vld [vmem:[%s116 + $0x8] sm:$0xff]
        %144 = vrot.lane.b32.xlu0 %v140, 2
        %v145 = vpop.permute.xlu0 %144
        %146 = vrot.lane.b32.xlu0 %v141, 2
        %v147 = vpop.permute.xlu0 %146
        %vm150 = vcmask 146448
        %151 = vst.msk [vmem:[#allocation2 + $0x2] sm:$0xff] %vm150, %v145
        %152 = vst.msk [vmem:[#allocation2 + $0xa] sm:$0xff] %vm150, %v147
        %v153 = vld [vmem:[#allocation2 + $0x2] sm:$0xff]
        %v154 = vld [vmem:[#allocation2 + $0xa] sm:$0xff]
        %157 = vrot.lane.b32.xlu0 %v153, 125
        %v158 = vpop.permute.xlu0 %157
        %159 = vrot.lane.b32.xlu0 %v154, 125
        %v160 = vpop.permute.xlu0 %159
        %v163 = vmin.f32 %v140, %v158
        %v164 = vmin.f32 %v141, %v160
        %165 = vrot.lane.b32.xlu0 %v153, 127
        %v166 = vpop.permute.xlu0 %165
        %167 = vrot.lane.b32.xlu0 %v154, 127
        %v168 = vpop.permute.xlu0 %167
        %v171 = vmin.f32 %v163, %v166
        %v172 = vmin.f32 %v164, %v168
        %175 = vrot.lane.b32.xlu0 %v171, 2
        %v176 = vpop.permute.xlu0 %175
        %177 = vrot.lane.b32.xlu0 %v172, 2
        %v178 = vpop.permute.xlu0 %177
        %181 = vst.msk [vmem:[#allocation2 + $0x2] sm:$0xff] %vm150, %v176
        %182 = vst.msk [vmem:[#allocation2 + $0xa] sm:$0xff] %vm150, %v178
        %v183 = vld [vmem:[#allocation2 + $0x3] sm:$0xff]
        %v184 = vld [vmem:[#allocation2 + $0xb] sm:$0xff]
        %187 = vrot.lane.b32.xlu0 %v183, 126
        %v188 = vpop.permute.xlu0 %187
        %189 = vrot.lane.b32.xlu0 %v184, 126
        %v190 = vpop.permute.xlu0 %189
        %v193 = vmin.f32 %v171, %v188
        %v194 = vmin.f32 %v172, %v190
        %v195 = vld [vmem:[#allocation2 + $0x1] sm:$0xff]
        %v196 = vld [vmem:[#allocation2 + $0x9] sm:$0xff]
        %199 = vrot.lane.b32.xlu0 %v195, 126
        %v200 = vpop.permute.xlu0 %199
        %201 = vrot.lane.b32.xlu0 %v196, 126
        %v202 = vpop.permute.xlu0 %201
        %v205 = vmin.f32 %v193, %v200
        %v206 = vmin.f32 %v194, %v202
        %209 = vrot.lane.b32.xlu0 %v205, 2
        %v210 = vpop.permute.xlu0 %209
        %211 = vrot.lane.b32.xlu0 %v206, 2
        %v212 = vpop.permute.xlu0 %211
        %215 = vst.msk [vmem:[#allocation2 + $0x2] sm:$0xff] %vm150, %v210
        %216 = vst.msk [vmem:[#allocation2 + $0xa] sm:$0xff] %vm150, %v212
        %v217 = vld [vmem:[#allocation2 + $0x2] sm:$0xff]
        %v218 = vld [vmem:[#allocation2 + $0xa] sm:$0xff]
        %221 = vrot.lane.b32.xlu0 %v217, 125
        %v222 = vpop.permute.xlu0 %221
        %223 = vrot.lane.b32.xlu0 %v218, 125
        %v224 = vpop.permute.xlu0 %223
        %v227 = vmax.f32 %v205, %v222
        %v228 = vmax.f32 %v206, %v224
        %229 = vrot.lane.b32.xlu0 %v217, 127
        %v230 = vpop.permute.xlu0 %229
        %231 = vrot.lane.b32.xlu0 %v218, 127
        %v232 = vpop.permute.xlu0 %231
        %v235 = vmax.f32 %v227, %v230
        %v236 = vmax.f32 %v228, %v232
        %237 = vrot.lane.b32.xlu0 %v217, 124
        %v238 = vpop.permute.xlu0 %237
        %239 = vrot.lane.b32.xlu0 %v218, 124
        %v240 = vpop.permute.xlu0 %239
        %v243 = vmax.f32 %v235, %v238
        %v244 = vmax.f32 %v236, %v240
        %v245 = vmax.f32 %v243, %v217
        %v246 = vmax.f32 %v244, %v218
        %249 = vrot.lane.b32.xlu0 %v245, 2
        %v250 = vpop.permute.xlu0 %249
        %251 = vrot.lane.b32.xlu0 %v246, 2
        %v252 = vpop.permute.xlu0 %251
        %255 = vst.msk [vmem:[#allocation2 + $0x2] sm:$0xff] %vm150, %v250
        %256 = vst.msk [vmem:[#allocation2 + $0xa] sm:$0xff] %vm150, %v252
        %v257 = vld [vmem:[#allocation2 + $0x3] sm:$0xff]
        %v258 = vld [vmem:[#allocation2 + $0xb] sm:$0xff]
        %261 = vrot.lane.b32.xlu0 %v257, 126
        %v262 = vpop.permute.xlu0 %261
        %263 = vrot.lane.b32.xlu0 %v258, 126
        %v264 = vpop.permute.xlu0 %263
        %v267 = vmax.f32 %v245, %v262
        %v268 = vmax.f32 %v246, %v264
        %v269 = vld [vmem:[#allocation2 + $0x1] sm:$0xff]
        %v270 = vld [vmem:[#allocation2 + $0x9] sm:$0xff]
        %273 = vrot.lane.b32.xlu0 %v269, 126
        %v274 = vpop.permute.xlu0 %273
        %275 = vrot.lane.b32.xlu0 %v270, 126
        %v276 = vpop.permute.xlu0 %275
        %v279 = vmax.f32 %v267, %v274
        %v280 = vmax.f32 %v268, %v276
        %v281 = vld [vmem:[#allocation2 + $0x4] sm:$0xff]
        %v282 = vld [vmem:[#allocation2 + $0xc] sm:$0xff]
        %285 = vrot.lane.b32.xlu0 %v281, 126
        %v286 = vpop.permute.xlu0 %285
        %287 = vrot.lane.b32.xlu0 %v282, 126
        %v288 = vpop.permute.xlu0 %287
        %v291 = vmax.f32 %v279, %v286
        %v292 = vmax.f32 %v280, %v288
        %v293 = vld [vmem:[#allocation2] sm:$0xff]
        %v294 = vld [vmem:[#allocation2 + $0x8] sm:$0xff]
        %297 = vrot.lane.b32.xlu0 %v293, 126
        %v298 = vpop.permute.xlu0 %297
        %299 = vrot.lane.b32.xlu0 %v294, 126
        %v300 = vpop.permute.xlu0 %299
        %v303 = vmax.f32 %v291, %v298
        %v304 = vmax.f32 %v292, %v300
        %307 = vrot.lane.b32.xlu0 %v303, 2
        %v308 = vpop.permute.xlu0 %307
        %309 = vrot.lane.b32.xlu0 %v304, 2
        %v310 = vpop.permute.xlu0 %309
        %313 = vst.msk [vmem:[#allocation2 + $0x2] sm:$0xff] %vm150, %v308
        %314 = vst.msk [vmem:[#allocation2 + $0xa] sm:$0xff] %vm150, %v310
        %v315 = vld [vmem:[#allocation2 + $0x2] sm:$0xff]
        %v316 = vld [vmem:[#allocation2 + $0xa] sm:$0xff]
        %319 = vrot.lane.b32.xlu0 %v315, 125
        %v320 = vpop.permute.xlu0 %319
        %321 = vrot.lane.b32.xlu0 %v316, 125
        %v322 = vpop.permute.xlu0 %321
        %v325 = vmin.f32 %v303, %v320
        %v326 = vmin.f32 %v304, %v322
        %327 = vrot.lane.b32.xlu0 %v315, 127
        %v328 = vpop.permute.xlu0 %327
        %329 = vrot.lane.b32.xlu0 %v316, 127
        %v330 = vpop.permute.xlu0 %329
        %v333 = vmin.f32 %v325, %v328
        %v334 = vmin.f32 %v326, %v330
        %337 = vrot.lane.b32.xlu0 %v333, 2
        %v338 = vpop.permute.xlu0 %337
        %339 = vrot.lane.b32.xlu0 %v334, 2
        %v340 = vpop.permute.xlu0 %339
        %343 = vst.msk [vmem:[#allocation2 + $0x2] sm:$0xff] %vm150, %v338
        %344 = vst.msk [vmem:[#allocation2 + $0xa] sm:$0xff] %vm150, %v340
        %v345 = vld [vmem:[#allocation2 + $0x3] sm:$0xff]
        %v346 = vld [vmem:[#allocation2 + $0xb] sm:$0xff]
        %349 = vrot.lane.b32.xlu0 %v345, 126
        %v350 = vpop.permute.xlu0 %349
        %351 = vrot.lane.b32.xlu0 %v346, 126
        %v352 = vpop.permute.xlu0 %351
        %v355 = vmin.f32 %v333, %v350
        %v356 = vmin.f32 %v334, %v352
        %v357 = vld [vmem:[#allocation2 + $0x1] sm:$0xff]
        %v358 = vld [vmem:[#allocation2 + $0x9] sm:$0xff]
        %361 = vrot.lane.b32.xlu0 %v357, 126
        %v362 = vpop.permute.xlu0 %361
        %363 = vrot.lane.b32.xlu0 %v358, 126
        %v364 = vpop.permute.xlu0 %363
        %v367 = vmin.f32 %v355, %v362
        %v368 = vmin.f32 %v356, %v364
        %v369 = vsub.f32 %v303, %v367
        %v370 = vsub.f32 %v304, %v368
        %v371 = vld [vmem:[%s116] sm:$0xff]
        %v372 = vld [vmem:[%s116 + $0x8] sm:$0xff]
        %v373 = vld [vmem:[%s116 + $0x10] sm:$0xff]
        %v374 = vld [vmem:[%s116 + $0x18] sm:$0xff]
        %vm375 = vcmask 130048
        %376 = vst.msk [vmem:[%s134] sm:$0xff] %vm375, %v371
        %377 = vst.msk [vmem:[%s134 + $0x8] sm:$0xff] %vm375, %v372
        %378 = vst.msk [vmem:[%s134 + $0x10] sm:$0xff] %vm375, %v373
        %379 = vst.msk [vmem:[%s134 + $0x18] sm:$0xff] %vm375, %v374
        %s380 = scalar_lea.vmem %s134, 32 [#allocation6]
        %381 = vst.msk [vmem:[%s380] sm:$0xff] %vm375, %v369
        %382 = vst.msk [vmem:[%s380 + $0x8] sm:$0xff] %vm375, %v370
        %s383 = sand.u32 %s52, 1
        %s384 = scalar_lea.sflag [#allocation5], %s383
        %s385 = sand.u32 %s52, 1
        %s386 = smul.addr %s385, 48
        %s387 = scalar_lea.vmem [#allocation6], %s386
        // Predicated region
        $region29: #{morph_pre_forward.1} parent=23 // pred_check
          %p388 = pneg %p62
        $region30: #{morph_pre_forward.1} parent=23 // pred_check_branch
          %390 = sbr.rel (%p388) target = $region32
        $region31: #{morph_pre_forward.1} parent=23 // pred_region
          %s392 = ssub.s32 768, 768
          %393 = vsyncadd %s384, %s392
          %s394 = smul.addr %s18, 6
          %s395 = smul.addr %s394, 128
          %s396 = scalar_lea.hbm %s1, %s395
          %s397 = sshll.u32 %s387, 4
          %s398 = int_to_ptr.vmem [resolvable:$true] %s397
          %403 = dma.vmem_to_hbm [thread:$0]  %s398, 768, %s396, %s384, 128, 128, 8
        $region32: #{morph_pre_forward.1} parent=23 // pred_fallthru
          _
      $region24: #{morph_pre_forward.1} parent=5 // pred_fallthru
        _
      %p404 = scmp.le.s32.totalorder 2, %s13
      // Predicated region
      $region33: #{morph_pre_forward.1} parent=5 // pred_check
        %p405 = pneg %p404
      $region34: #{morph_pre_forward.1} parent=5 // pred_check_branch
        %407 = sbr.rel (%p405) target = $region36
      $region35: #{morph_pre_forward.1} parent=5 // pred_region
        %s408 = ssub.s32 %s13, 2
        // Predicated region
        $region37: #{morph_pre_forward.1} parent=35 // pred_check
          %p409 = pneg %p68
        $region38: #{morph_pre_forward.1} parent=35 // pred_check_branch
          %411 = sbr.rel (%p409) target = $region40
        $region39: #{morph_pre_forward.1} parent=35 // pred_region
          %s412 = sand.u32 %s53, 1
          %s413 = scalar_lea.sflag [#allocation5], %s412
          %s414 = sand.u32 %s53, 1
          %s415 = smul.addr %s414, 48
          %s416 = scalar_lea.vmem [#allocation6], %s415
          %417 = dma.done %s413, 768
        $region40: #{morph_pre_forward.1} parent=35 // pred_fallthru
          _
      $region36: #{morph_pre_forward.1} parent=5 // pred_fallthru
        _
    $region6: #{morph_pre_forward.1} parent=1 // loop_footer
      %s17 = sadd.s32 1, %s13
    $region7: #{morph_pre_forward.1} parent=1 // loop_footer_branch
      %12 = sbr.rel target = $region3
    $region8: #{morph_pre_forward.1} parent=1 // loop_exit
      _
    %418 = vsyncpa [#allocation4], 1
    %s419 = scalar_lea.sflag [#allocation4], 1
    %420 = vsyncpa %s419, 1
    %421 = vsyncpa [#allocation5], 1
    %s422 = scalar_lea.sflag [#allocation5], 1
    %423 = vsyncpa %s422, 1

</llo_original>
